<compile_context>
chip_gen: v7x
topology: tpu7x:2x2x1
jax: 0.10.0
libtpu: 0.0.40
codegen_flags: <defaults>
</compile_context>

<pallas_src>
import functools

import jax
import jax.numpy as jnp
from jax.experimental import pallas as pl
from jax.experimental.pallas import tpu as pltpu


def _scale_kernel(x_ref, e_ref, y_ref):
    # x_ref: (tm, tn), e_ref: (1, tn) -> broadcast over rows (sublanes).
    # Pure VPU multiply; exp was hoisted to the wrapper.
    y_ref[...] = (x_ref[...] * e_ref[...]).astype(y_ref.dtype)


@functools.partial(jax.jit, static_argnames=("inv",))
def nice_scale_forward(x, scales, inv=False):
    """Returns (X * exp(+/-scales), sum(+/-scales)) like NiceScaleLayer.forward."""
    B, N = x.shape
    assert scales.shape == (1, N)

    # Sign of the scales handles the inv / non-inv branch.
    s = -scales if inv else scales

    # Log-det term: tiny (1, N) reduction -> let XLA do it in the wrapper.
    logdet = jnp.sum(s)

    # Hoist the exponential: computed once on the (1, N) parameter row.
    e = jnp.exp(s)

    # dtype-aware sublane multiple for the batch tile (f32: 8, bf16: 16, i8: 32).
    itemsize = jnp.dtype(x.dtype).itemsize
    sub = {4: 8, 2: 16, 1: 32}.get(itemsize, 8)

    # Tile caps: ~512 x 1024 f32 => ~2 MiB/block; x + y double-buffered
    # ~8 MiB, safe on all generations (v5e 16 MiB scoped default, v7x 64 MiB
    # physical). Block dims that equal the full array dim are exempt from the
    # (8, 128) divisibility rule, so small/unaligned shapes use full-dim tiles.
    TM_CAP = 512                      # multiple of 8 / 16 / 32
    TN_CAP = 1024                     # multiple of 128
    tm = B if B <= TM_CAP else TM_CAP
    tn = N if N <= TN_CAP else TN_CAP
    assert tm == B or tm % sub == 0
    assert tn == N or tn % 128 == 0

    # Feature axis outermost: the exp-row block index is constant over the
    # inner batch loop, so its (tiny) DMA is only re-issued when j changes.
    grid = (pl.cdiv(N, tn), pl.cdiv(B, tm))

    cost = pl.CostEstimate(
        flops=B * N,                                  # one multiply per element
        transcendentals=N,                            # exp on the (1, N) row (wrapper)
        bytes_accessed=(2 * B * N + N) * itemsize,    # read x, write y, read e
    )

    y = pl.pallas_call(
        _scale_kernel,
        out_shape=jax.ShapeDtypeStruct((B, N), x.dtype),
        grid_spec=pl.GridSpec(
            grid=grid,
            in_specs=[
                pl.BlockSpec((tm, tn), lambda j, i: (i, j)),
                pl.BlockSpec((1, tn), lambda j, i: (0, j)),
            ],
            out_specs=pl.BlockSpec((tm, tn), lambda j, i: (i, j)),
        ),
        compiler_params=pltpu.CompilerParams(
            dimension_semantics=("parallel", "parallel"),
        ),
        cost_estimate=cost,
    )(x, e)

    return y, logdet


if __name__ == "__main__":
    key = jax.random.PRNGKey(0)
    k_s, k_x = jax.random.split(key)

    batch = 8
    size = 32

    # The module initializes scales to zeros; use small random scales so the
    # check is non-trivial.
    scales = 0.1 * jax.random.normal(k_s, (1, size), jnp.float32)
    x = jax.random.normal(k_x, (batch, size), jnp.float32)

    # Forward (inv=False)
    y, logdet = nice_scale_forward(x, scales, inv=False)
    jax.block_until_ready((y, logdet))
    assert y.shape == (batch, size)
    assert jnp.allclose(y, x * jnp.exp(scales), atol=1e-5, rtol=1e-5)
    assert jnp.allclose(logdet, jnp.sum(scales), atol=1e-5, rtol=1e-5)

    # Forward (inv=True)
    y_i, logdet_i = nice_scale_forward(x, scales, inv=True)
    jax.block_until_ready((y_i, logdet_i))
    assert jnp.allclose(y_i, x * jnp.exp(-scales), atol=1e-5, rtol=1e-5)
    assert jnp.allclose(logdet_i, jnp.sum(-scales), atol=1e-5, rtol=1e-5)

    print("KERNEL_OK")
</pallas_src>

<mosaic_0001>
module attributes {stable_mosaic.version = 11 : i64} {
  func.func @_scale_kernel(%arg0: i32, %arg1: i32, %arg2: memref<8x32xf32, #tpu.memory_space<vmem>>, %arg3: memref<1x32xf32, #tpu.memory_space<vmem>>, %arg4: memref<8x32xf32, #tpu.memory_space<vmem>>) attributes {dimension_semantics = [#tpu.dimension_semantics<parallel>, #tpu.dimension_semantics<parallel>], iteration_bounds = array<i64: 1, 1>, scalar_prefetch = 0 : i64, scratch_operands = 0 : i64, tpu.core_type = #tpu.core_type<tc>, window_params = [{transform_indices = @transform_0, window_bounds = array<i64: 8, 32>}, {transform_indices = @transform_1, window_bounds = array<i64: 1, 32>}, {transform_indices = @transform_2, window_bounds = array<i64: 8, 32>}]} {
    %c0 = arith.constant 0 : index
    %c0_0 = arith.constant 0 : index
    %0 = vector.load %arg2[%c0, %c0_0] : memref<8x32xf32, #tpu.memory_space<vmem>>, vector<8x32xf32>
    %c0_1 = arith.constant 0 : index
    %c0_2 = arith.constant 0 : index
    %1 = vector.load %arg3[%c0_1, %c0_2] : memref<1x32xf32, #tpu.memory_space<vmem>>, vector<1x32xf32>
    %2 = vector.broadcast %1 : vector<1x32xf32> to vector<8x32xf32>
    %3 = arith.mulf %0, %2 : vector<8x32xf32>
    %c0_3 = arith.constant 0 : index
    %c0_4 = arith.constant 0 : index
    %4 = vector.load %arg4[%c0_3, %c0_4] : memref<8x32xf32, #tpu.memory_space<vmem>>, vector<8x32xf32>
    tpu.vector_store %arg4[%c0_3, %c0_4], %3 {strides = array<i32>} : memref<8x32xf32, #tpu.memory_space<vmem>>, vector<8x32xf32>,
    return
  }
  func.func @transform_0(%arg0: i32, %arg1: i32) -> (i32, i32) {
    %c0_i32 = arith.constant 0 : i32
    return %arg1, %arg0 : i32, i32
  }
  func.func @transform_1(%arg0: i32, %arg1: i32) -> (i32, i32) {
    %c0_i32 = arith.constant 0 : i32
    %c0_i32_0 = arith.constant 0 : i32
    return %c0_i32, %arg0 : i32, i32
  }
  func.func @transform_2(%arg0: i32, %arg1: i32) -> (i32, i32) {
    %c0_i32 = arith.constant 0 : i32
    return %arg1, %arg0 : i32, i32
  }
}

</mosaic_0001>

<llo_original>
// kernel: nice_scale_forward.1
$region0: #{nice_scale_forward.1}
  #allocation0 [shape = 'u32[]', space=smem, size = 0x4, offset = 0x4, fixed_abs, tag = 'smem constant byte address 0x4 - core index']
  #allocation1 [shape = 'u32[144,128]{1,0:T(1,128)}', space=vmem, size = 0x12000, scoped, tag = 'internal scratch']
  %s0 = inlined_call_operand.vmem [shape: f32[8,32], index: 0, kind: input, shape index: {}]
  %s1 = inlined_call_operand.vmem [shape: f32[1,32], index: 1, kind: input, shape index: {}]
  %s2 = inlined_call_operand.hbm [shape: f32[8,32], index: 2, kind: output, shape index: {}]
  %s3 = sld [smem:[#allocation0]]
  $region18: #{nice_scale_forward.1} parent=0
    _
  %s5 = ssub.s32 1, %s3
  %s6 = scalar_select 0, %s5, %s3
  $region1: #{nice_scale_forward.1} parent=0
    #allocation2 [shape = 'u8[4096]{0}', space=vmem, size = 0x1000, scoped, tag = 'output window, operand 0, single buffered']
    #allocation3 [shape = 's32[1]{0}', space=sflag, size = 0x4, scoped, tag = 'scoped memory for nice_scale_forward.1']
    %7 = vsyncpa [#allocation3], 0
    // Predicated region
    $region2: #{nice_scale_forward.1} parent=1 // pred_check
      _
    $region3: #{nice_scale_forward.1} parent=1 // pred_check_branch
      %9 = sbr.rel (0) target = $region5
    $region4: #{nice_scale_forward.1} parent=1 // pred_region
      _
    $region5: #{nice_scale_forward.1} parent=1 // pred_fallthru
      _
    // Predicated region
    $region6: #{nice_scale_forward.1} parent=1 // pred_check
      _
    $region7: #{nice_scale_forward.1} parent=1 // pred_check_branch
      %11 = sbr.rel (0) target = $region9
    $region8: #{nice_scale_forward.1} parent=1 // pred_region
      _
    $region9: #{nice_scale_forward.1} parent=1 // pred_fallthru
      _
    %v12 = vld [vmem:[%s0] sm:$0xff]
    %v13 = vld [vmem:[%s1] sm:$0x1]
    %v15 = vlaneseq
    %v16 = vshrl.u32 %v15, 7
    %v17 = vsub.s32 0, %v16
    %v18 = vrot.slane %v13, %v17
    %v20 = vmul.f32 %v12, %v18
    %vm21 = vcmask 261120
    %22 = vst.msk [vmem:[#allocation2] sm:$0xff] %vm21, %v20
    // Predicated region
    $region10: #{nice_scale_forward.1} parent=1 // pred_check
      _
    $region11: #{nice_scale_forward.1} parent=1 // pred_check_branch
      %24 = sbr.rel (0) target = $region13
    $region12: #{nice_scale_forward.1} parent=1 // pred_region
      %s26 = ssub.s32 128, 128
      %27 = vsyncadd [#allocation3], %s26
      %s29 = sshll.u32 [#allocation2], 4
      %s30 = int_to_ptr.vmem [resolvable:$true] %s29
      %32 = dma.vmem_to_hbm [thread:$0]  %s30, 128, %s2, [#allocation3]
    $region13: #{nice_scale_forward.1} parent=1 // pred_fallthru
      _
    // Predicated region
    $region14: #{nice_scale_forward.1} parent=1 // pred_check
      _
    $region15: #{nice_scale_forward.1} parent=1 // pred_check_branch
      %34 = sbr.rel (0) target = $region17
    $region16: #{nice_scale_forward.1} parent=1 // pred_region
      %35 = dma.done [#allocation3], 128
    $region17: #{nice_scale_forward.1} parent=1 // pred_fallthru
      _
    %36 = vsyncpa [#allocation3], 1

</llo_original>
